<compile_context>
chip_gen: v7x
topology: tpu7x:2x2x1
jax: 0.10.0
libtpu: 0.0.40
codegen_flags: <defaults>
</compile_context>

<pallas_src>
import functools

import jax
import jax.numpy as jnp
from jax.experimental import pallas as pl
from jax.experimental.pallas import tpu as pltpu

BN_EPS = 1e-5
LANE = 128
TM_MAX = 1024  # big tiles amortize the ~0.35 us per-grid-step overhead


def _round_up(x, m):
    return (x + m - 1) // m * m


def dense_net_kernel(x_ref,
                     w1_ref, b1_ref,
                     w2_ref, b2_ref,
                     w3_ref, b3_ref,
                     w4_ref, b4_ref,
                     out_ref):
    """One (TM, D) f32 batch tile through 4 fused Linear(+folded BN)(+ReLU) layers."""

    def linear(h, w_ref, b_ref, relu):
        y = jnp.dot(h, w_ref[...], preferred_element_type=jnp.float32) + b_ref[...]
        if relu:
            y = jnp.maximum(y, 0.0)
        return y

    # Cast f32 -> bf16 in-kernel (VPU slack is free; avoids a wrapper pass over x).
    h = linear(x_ref[...].astype(jnp.bfloat16), w1_ref, b1_ref, True).astype(jnp.bfloat16)
    h = linear(h, w2_ref, b2_ref, True).astype(jnp.bfloat16)
    h = linear(h, w3_ref, b3_ref, True).astype(jnp.bfloat16)
    out_ref[...] = linear(h, w4_ref, b4_ref, False).astype(out_ref.dtype)


def _pick_tile(B):
    """Batch tile size: multiple of 16, <= TM_MAX, and >= 2 grid steps once
    the padded batch is >= 32 so v7x's two TensorCores both get work."""
    b16 = _round_up(B, 16)
    if b16 >= 32:
        tm = min(TM_MAX, _round_up(pl.cdiv(b16, 2), 16))
    else:
        tm = b16
    return tm


@functools.partial(jax.jit, static_argnums=(2,))
def simple_dense_net_forward(x_nchw, kernel_params, out_size):
    """x_nchw: (B, C, H, W) float32. kernel_params: output of prepare_kernel_params.
    Returns (B, out_size) float32 logits."""
    B = x_nchw.shape[0]
    x = x_nchw.reshape(B, -1)  # matches torch x.view(batch, -1); stays f32
    D = x.shape[1]

    tm = _pick_tile(B)
    b_pad = _round_up(B, tm)
    if b_pad != B:
        x = jnp.pad(x, ((0, b_pad - B), (0, 0)))

    w1, b1, w2, b2, w3, b3, w4, b4 = kernel_params
    out_pad = w4.shape[1]

    tile = lambda i: (i, 0)     # batch-tiled arrays
    const = lambda i: (0, 0)    # weights/biases: resident across grid steps

    out = pl.pallas_call(
        dense_net_kernel,
        out_shape=jax.ShapeDtypeStruct((b_pad, out_pad), jnp.bfloat16),
        grid=(b_pad // tm,),
        in_specs=[
            pl.BlockSpec((tm, D), tile),
            pl.BlockSpec(w1.shape, const), pl.BlockSpec(b1.shape, const),
            pl.BlockSpec(w2.shape, const), pl.BlockSpec(b2.shape, const),
            pl.BlockSpec(w3.shape, const), pl.BlockSpec(b3.shape, const),
            pl.BlockSpec(w4.shape, const), pl.BlockSpec(b4.shape, const),
        ],
        out_specs=pl.BlockSpec((tm, out_pad), tile),
        compiler_params=pltpu.CompilerParams(
            dimension_semantics=("parallel",)),
    )(x, w1, b1, w2, b2, w3, b3, w4, b4)

    # Slice padded rows / padded lanes off and return f32 logits.
    return out[:B, :out_size].astype(jnp.float32)


def prepare_kernel_params(params):
    """Fold eval-mode BN into each Linear, pad the head to a lane-dense width,
    cast weights to bf16 (biases stay f32). Done once, outside the kernel."""
    folded = []
    for i in (1, 2, 3):
        w, b, bn = params[f"w{i}"], params[f"b{i}"], params[f"bn{i}"]
        gamma, beta, mean, var = bn[0], bn[1], bn[2], bn[3]
        scale = gamma * jax.lax.rsqrt(var + BN_EPS)
        w_f = w * scale[None, :]
        b_f = (b - mean[None, :]) * scale[None, :] + beta[None, :]
        folded += [w_f.astype(jnp.bfloat16), b_f.astype(jnp.float32)]

    w4, b4 = params["w4"], params["b4"]
    out_size = w4.shape[1]
    out_pad = _round_up(out_size, LANE)
    if out_pad != out_size:
        w4 = jnp.pad(w4, ((0, 0), (0, out_pad - out_size)))
        b4 = jnp.pad(b4, ((0, 0), (0, out_pad - out_size)))
    folded += [w4.astype(jnp.bfloat16), b4.astype(jnp.float32)]
    return tuple(folded)


def init_params(key, input_size, lin1, lin2, lin3, out_size):
    """Deterministic init mimicking PyTorch nn.Linear / nn.BatchNorm1d defaults.

    Linear weights are stored transposed (in, out); biases as (1, out);
    each BatchNorm is stacked as rows [gamma, beta, running_mean, running_var].
    """
    def linear(k, fan_in, fan_out):
        kw, kb = jax.random.split(k)
        bound = 1.0 / jnp.sqrt(jnp.float32(fan_in))
        w = jax.random.uniform(kw, (fan_in, fan_out), jnp.float32, -bound, bound)
        b = jax.random.uniform(kb, (1, fan_out), jnp.float32, -bound, bound)
        return w, b

    def bn(width):
        return jnp.stack([
            jnp.ones((width,), jnp.float32),    # gamma
            jnp.zeros((width,), jnp.float32),   # beta
            jnp.zeros((width,), jnp.float32),   # running_mean
            jnp.ones((width,), jnp.float32),    # running_var
        ], axis=0)

    k1, k2, k3, k4 = jax.random.split(key, 4)
    w1, b1 = linear(k1, input_size, lin1)
    w2, b2 = linear(k2, lin1, lin2)
    w3, b3 = linear(k3, lin2, lin3)
    w4, b4 = linear(k4, lin3, out_size)
    return {
        "w1": w1, "b1": b1, "bn1": bn(lin1),
        "w2": w2, "b2": b2, "bn2": bn(lin2),
        "w3": w3, "b3": b3, "bn3": bn(lin3),
        "w4": w4, "b4": b4,
    }


def reference_forward(x_nchw, params):
    """Pure-JAX f32 reference mirroring the PyTorch forward (eval-mode BN)."""
    h = x_nchw.reshape(x_nchw.shape[0], -1)
    for i in (1, 2, 3):
        w, b, bn = params[f"w{i}"], params[f"b{i}"], params[f"bn{i}"]
        y = h @ w + b
        y = (y - bn[2]) * (bn[0] / jnp.sqrt(bn[3] + BN_EPS)) + bn[1]
        h = jnp.maximum(y, 0.0)
    return h @ params["w4"] + params["b4"]


if __name__ == "__main__":
    # Small shapes consistent with the module: B=2, C=4, H=W=16 -> input_size=1024.
    B, C, H, W = 2, 4, 16, 16
    input_size = C * H * W
    lin1 = lin2 = lin3 = 128
    out_size = 10  # default single head: heads_config = {'digit': 10}

    key = jax.random.PRNGKey(0)
    k_x, k_p = jax.random.split(key)
    x = jax.random.normal(k_x, (B, C, H, W), jnp.float32)
    params = init_params(k_p, input_size, lin1, lin2, lin3, out_size)
    kernel_params = prepare_kernel_params(params)

    out = simple_dense_net_forward(x, kernel_params, out_size)
    out = jax.block_until_ready(out)

    ref = reference_forward(x, params)
    assert out.shape == (B, out_size)
    # bf16 weights/activations/output in the kernel vs f32 reference -> looser
    # tolerance (inference-grade precision; documented divergence).
    assert jnp.allclose(out, ref, atol=5e-2, rtol=5e-2), "mismatch vs reference"

    print("KERNEL_OK")
</pallas_src>

<mosaic_0001>
module attributes {stable_mosaic.version = 11 : i64} {
  func.func @dense_net_kernel(%arg0: i32, %arg1: memref<16x1024xf32, #tpu.memory_space<vmem>>, %arg2: memref<1024x128xbf16, #tpu.memory_space<vmem>>, %arg3: memref<1x128xf32, #tpu.memory_space<vmem>>, %arg4: memref<128x128xbf16, #tpu.memory_space<vmem>>, %arg5: memref<1x128xf32, #tpu.memory_space<vmem>>, %arg6: memref<128x128xbf16, #tpu.memory_space<vmem>>, %arg7: memref<1x128xf32, #tpu.memory_space<vmem>>, %arg8: memref<128x128xbf16, #tpu.memory_space<vmem>>, %arg9: memref<1x128xf32, #tpu.memory_space<vmem>>, %arg10: memref<16x128xbf16, #tpu.memory_space<vmem>>) attributes {dimension_semantics = [#tpu.dimension_semantics<parallel>], iteration_bounds = array<i64: 1>, scalar_prefetch = 0 : i64, scratch_operands = 0 : i64, tpu.core_type = #tpu.core_type<tc>, window_params = [{transform_indices = @transform_0, window_bounds = array<i64: 16, 1024>}, {pipeline_mode = #tpu.pipeline_mode<synchronous>, transform_indices = @transform_1, window_bounds = array<i64: 1024, 128>}, {pipeline_mode = #tpu.pipeline_mode<synchronous>, transform_indices = @transform_2, window_bounds = array<i64: 1, 128>}, {pipeline_mode = #tpu.pipeline_mode<synchronous>, transform_indices = @transform_3, window_bounds = array<i64: 128, 128>}, {pipeline_mode = #tpu.pipeline_mode<synchronous>, transform_indices = @transform_4, window_bounds = array<i64: 1, 128>}, {pipeline_mode = #tpu.pipeline_mode<synchronous>, transform_indices = @transform_5, window_bounds = array<i64: 128, 128>}, {pipeline_mode = #tpu.pipeline_mode<synchronous>, transform_indices = @transform_6, window_bounds = array<i64: 1, 128>}, {pipeline_mode = #tpu.pipeline_mode<synchronous>, transform_indices = @transform_7, window_bounds = array<i64: 128, 128>}, {pipeline_mode = #tpu.pipeline_mode<synchronous>, transform_indices = @transform_8, window_bounds = array<i64: 1, 128>}, {transform_indices = @transform_9, window_bounds = array<i64: 16, 128>}]} {
    %c0 = arith.constant 0 : index
    %c0_0 = arith.constant 0 : index
    %0 = vector.load %arg1[%c0, %c0_0] : memref<16x1024xf32, #tpu.memory_space<vmem>>, vector<16x1024xf32>
    %1 = arith.truncf %0 : vector<16x1024xf32> to vector<16x1024xbf16>
    %c0_1 = arith.constant 0 : index
    %c0_2 = arith.constant 0 : index
    %2 = vector.load %arg2[%c0_1, %c0_2] : memref<1024x128xbf16, #tpu.memory_space<vmem>>, vector<1024x128xbf16>
    %cst = arith.constant dense<0.000000e+00> : vector<16x128xf32>
    %3 = tpu.matmul %1, %2, %cst {dimension_numbers = #tpu.dot_dimension_numbers<[1], [0], [0], [1], [0, 0, 1, 1], [], []>} : vector<16x1024xbf16>, vector<1024x128xbf16>, vector<16x128xf32> -> vector<16x128xf32>
    %c0_3 = arith.constant 0 : index
    %c0_4 = arith.constant 0 : index
    %4 = vector.load %arg3[%c0_3, %c0_4] : memref<1x128xf32, #tpu.memory_space<vmem>>, vector<1x128xf32>
    %5 = vector.broadcast %4 : vector<1x128xf32> to vector<16x128xf32>
    %6 = arith.addf %3, %5 : vector<16x128xf32>
    %cst_5 = arith.constant 0.000000e+00 : f32
    %7 = vector.broadcast %cst_5 : f32 to vector<16x128xf32>
    %8 = arith.maximumf %6, %7 : vector<16x128xf32>
    %9 = arith.truncf %8 : vector<16x128xf32> to vector<16x128xbf16>
    %c0_6 = arith.constant 0 : index
    %c0_7 = arith.constant 0 : index
    %10 = vector.load %arg4[%c0_6, %c0_7] : memref<128x128xbf16, #tpu.memory_space<vmem>>, vector<128x128xbf16>
    %cst_8 = arith.constant dense<0.000000e+00> : vector<16x128xf32>
    %11 = tpu.matmul %9, %10, %cst_8 {dimension_numbers = #tpu.dot_dimension_numbers<[1], [0], [0], [1], [0, 0, 1, 1], [], []>} : vector<16x128xbf16>, vector<128x128xbf16>, vector<16x128xf32> -> vector<16x128xf32>
    %c0_9 = arith.constant 0 : index
    %c0_10 = arith.constant 0 : index
    %12 = vector.load %arg5[%c0_9, %c0_10] : memref<1x128xf32, #tpu.memory_space<vmem>>, vector<1x128xf32>
    %13 = vector.broadcast %12 : vector<1x128xf32> to vector<16x128xf32>
    %14 = arith.addf %11, %13 : vector<16x128xf32>
    %cst_11 = arith.constant 0.000000e+00 : f32
    %15 = vector.broadcast %cst_11 : f32 to vector<16x128xf32>
    %16 = arith.maximumf %14, %15 : vector<16x128xf32>
    %17 = arith.truncf %16 : vector<16x128xf32> to vector<16x128xbf16>
    %c0_12 = arith.constant 0 : index
    %c0_13 = arith.constant 0 : index
    %18 = vector.load %arg6[%c0_12, %c0_13] : memref<128x128xbf16, #tpu.memory_space<vmem>>, vector<128x128xbf16>
    %cst_14 = arith.constant dense<0.000000e+00> : vector<16x128xf32>
    %19 = tpu.matmul %17, %18, %cst_14 {dimension_numbers = #tpu.dot_dimension_numbers<[1], [0], [0], [1], [0, 0, 1, 1], [], []>} : vector<16x128xbf16>, vector<128x128xbf16>, vector<16x128xf32> -> vector<16x128xf32>
    %c0_15 = arith.constant 0 : index
    %c0_16 = arith.constant 0 : index
    %20 = vector.load %arg7[%c0_15, %c0_16] : memref<1x128xf32, #tpu.memory_space<vmem>>, vector<1x128xf32>
    %21 = vector.broadcast %20 : vector<1x128xf32> to vector<16x128xf32>
    %22 = arith.addf %19, %21 : vector<16x128xf32>
    %cst_17 = arith.constant 0.000000e+00 : f32
    %23 = vector.broadcast %cst_17 : f32 to vector<16x128xf32>
    %24 = arith.maximumf %22, %23 : vector<16x128xf32>
    %25 = arith.truncf %24 : vector<16x128xf32> to vector<16x128xbf16>
    %c0_18 = arith.constant 0 : index
    %c0_19 = arith.constant 0 : index
    %26 = vector.load %arg8[%c0_18, %c0_19] : memref<128x128xbf16, #tpu.memory_space<vmem>>, vector<128x128xbf16>
    %cst_20 = arith.constant dense<0.000000e+00> : vector<16x128xf32>
    %27 = tpu.matmul %25, %26, %cst_20 {dimension_numbers = #tpu.dot_dimension_numbers<[1], [0], [0], [1], [0, 0, 1, 1], [], []>} : vector<16x128xbf16>, vector<128x128xbf16>, vector<16x128xf32> -> vector<16x128xf32>
    %c0_21 = arith.constant 0 : index
    %c0_22 = arith.constant 0 : index
    %28 = vector.load %arg9[%c0_21, %c0_22] : memref<1x128xf32, #tpu.memory_space<vmem>>, vector<1x128xf32>
    %29 = vector.broadcast %28 : vector<1x128xf32> to vector<16x128xf32>
    %30 = arith.addf %27, %29 : vector<16x128xf32>
    %31 = arith.truncf %30 : vector<16x128xf32> to vector<16x128xbf16>
    %c0_23 = arith.constant 0 : index
    %c0_24 = arith.constant 0 : index
    %32 = vector.load %arg10[%c0_23, %c0_24] : memref<16x128xbf16, #tpu.memory_space<vmem>>, vector<16x128xbf16>
    tpu.vector_store %arg10[%c0_23, %c0_24], %31 {strides = array<i32>} : memref<16x128xbf16, #tpu.memory_space<vmem>>, vector<16x128xbf16>,
    return
  }
  func.func @transform_0(%arg0: i32) -> (i32, i32) {
    %c0_i32 = arith.constant 0 : i32
    %c0_i32_0 = arith.constant 0 : i32
    return %arg0, %c0_i32 : i32, i32
  }
  func.func @transform_1(%arg0: i32) -> (i32, i32) {
    %c0_i32 = arith.constant 0 : i32
    %c0_i32_0 = arith.constant 0 : i32
    %c0_i32_1 = arith.constant 0 : i32
    return %c0_i32, %c0_i32_0 : i32, i32
  }
  func.func @transform_2(%arg0: i32) -> (i32, i32) {
    %c0_i32 = arith.constant 0 : i32
    %c0_i32_0 = arith.constant 0 : i32
    %c0_i32_1 = arith.constant 0 : i32
    return %c0_i32, %c0_i32_0 : i32, i32
  }
  func.func @transform_3(%arg0: i32) -> (i32, i32) {
    %c0_i32 = arith.constant 0 : i32
    %c0_i32_0 = arith.constant 0 : i32
    %c0_i32_1 = arith.constant 0 : i32
    return %c0_i32, %c0_i32_0 : i32, i32
  }
  func.func @transform_4(%arg0: i32) -> (i32, i32) {
    %c0_i32 = arith.constant 0 : i32
    %c0_i32_0 = arith.constant 0 : i32
    %c0_i32_1 = arith.constant 0 : i32
    return %c0_i32, %c0_i32_0 : i32, i32
  }
  func.func @transform_5(%arg0: i32) -> (i32, i32) {
    %c0_i32 = arith.constant 0 : i32
    %c0_i32_0 = arith.constant 0 : i32
    %c0_i32_1 = arith.constant 0 : i32
    return %c0_i32, %c0_i32_0 : i32, i32
  }
  func.func @transform_6(%arg0: i32) -> (i32, i32) {
    %c0_i32 = arith.constant 0 : i32
    %c0_i32_0 = arith.constant 0 : i32
    %c0_i32_1 = arith.constant 0 : i32
    return %c0_i32, %c0_i32_0 : i32, i32
  }
  func.func @transform_7(%arg0: i32) -> (i32, i32) {
    %c0_i32 = arith.constant 0 : i32
    %c0_i32_0 = arith.constant 0 : i32
    %c0_i32_1 = arith.constant 0 : i32
    return %c0_i32, %c0_i32_0 : i32, i32
  }
  func.func @transform_8(%arg0: i32) -> (i32, i32) {
    %c0_i32 = arith.constant 0 : i32
    %c0_i32_0 = arith.constant 0 : i32
    %c0_i32_1 = arith.constant 0 : i32
    return %c0_i32, %c0_i32_0 : i32, i32
  }
  func.func @transform_9(%arg0: i32) -> (i32, i32) {
    %c0_i32 = arith.constant 0 : i32
    %c0_i32_0 = arith.constant 0 : i32
    return %arg0, %c0_i32 : i32, i32
  }
}

</mosaic_0001>

<llo_original>
// kernel: simple_dense_net_forward.1
$region0: #{simple_dense_net_forward.1}
  #allocation0 [shape = 'u32[]', space=smem, size = 0x4, offset = 0x4, fixed_abs, tag = 'smem constant byte address 0x4 - core index']
  #allocation1 [shape = 'u32[144,128]{1,0:T(1,128)}', space=vmem, size = 0x12000, scoped, tag = 'internal scratch']
  %s0 = inlined_call_operand.vmem [shape: f32[16,1024], index: 0, kind: input, shape index: {}]
  %s1 = inlined_call_operand.hbm [shape: bf16[1024,128], index: 1, kind: input, shape index: {}]
  %s2 = inlined_call_operand.vmem [shape: f32[1,128], index: 2, kind: input, shape index: {}]
  %s3 = inlined_call_operand.vmem [shape: bf16[128,128], index: 3, kind: input, shape index: {}]
  %s4 = inlined_call_operand.vmem [shape: f32[1,128], index: 4, kind: input, shape index: {}]
  %s5 = inlined_call_operand.vmem [shape: bf16[128,128], index: 5, kind: input, shape index: {}]
  %s6 = inlined_call_operand.vmem [shape: f32[1,128], index: 6, kind: input, shape index: {}]
  %s7 = inlined_call_operand.vmem [shape: bf16[128,128], index: 7, kind: input, shape index: {}]
  %s8 = inlined_call_operand.vmem [shape: f32[1,128], index: 8, kind: input, shape index: {}]
  %s9 = inlined_call_operand.vmem [shape: bf16[16,128], index: 9, kind: output, shape index: {}]
  %s10 = sld [smem:[#allocation0]]
  $region50: #{simple_dense_net_forward.1} parent=0
    _
  %s12 = ssub.s32 1, %s10
  %s13 = scalar_select 0, %s12, %s10
  $region1: #{simple_dense_net_forward.1} parent=0
    #allocation2 [shape = 'u8[262144]{0}', space=vmem, size = 0x40000, scoped, tag = 'input window, operand 1, single buffered']
    #allocation3 [shape = 's32[1]{0}', space=sflag, size = 0x4, scoped, tag = 'scoped memory for simple_dense_net_forward.1']
    %14 = vsyncpa [#allocation3], 0
    // Predicated region
    $region2: #{simple_dense_net_forward.1} parent=1 // pred_check
      _
    $region3: #{simple_dense_net_forward.1} parent=1 // pred_check_branch
      %16 = sbr.rel (0) target = $region5
    $region4: #{simple_dense_net_forward.1} parent=1 // pred_region
      _
    $region5: #{simple_dense_net_forward.1} parent=1 // pred_fallthru
      _
    // Predicated region
    $region6: #{simple_dense_net_forward.1} parent=1 // pred_check
      _
    $region7: #{simple_dense_net_forward.1} parent=1 // pred_check_branch
      %18 = sbr.rel (0) target = $region9
    $region8: #{simple_dense_net_forward.1} parent=1 // pred_region
      %s20 = ssub.s32 8192, 8192
      %21 = vsyncadd [#allocation3], %s20
      %s22 = sshll.u32 [#allocation2], 4
      %s23 = int_to_ptr.vmem [resolvable:$true] %s22
      %28 = dma.hbm_to_vmem [thread:$0]  %s1, 8192, %s23, [#allocation3], 64, 64, 4
    $region9: #{simple_dense_net_forward.1} parent=1 // pred_fallthru
      _
    // Predicated region
    $region10: #{simple_dense_net_forward.1} parent=1 // pred_check
      _
    $region11: #{simple_dense_net_forward.1} parent=1 // pred_check_branch
      %30 = sbr.rel (0) target = $region13
    $region12: #{simple_dense_net_forward.1} parent=1 // pred_region
      _
    $region13: #{simple_dense_net_forward.1} parent=1 // pred_fallthru
      _
    // Predicated region
    $region14: #{simple_dense_net_forward.1} parent=1 // pred_check
      _
    $region15: #{simple_dense_net_forward.1} parent=1 // pred_check_branch
      %32 = sbr.rel (0) target = $region17
    $region16: #{simple_dense_net_forward.1} parent=1 // pred_region
      _
    $region17: #{simple_dense_net_forward.1} parent=1 // pred_fallthru
      _
    // Predicated region
    $region18: #{simple_dense_net_forward.1} parent=1 // pred_check
      _
    $region19: #{simple_dense_net_forward.1} parent=1 // pred_check_branch
      %34 = sbr.rel (0) target = $region21
    $region20: #{simple_dense_net_forward.1} parent=1 // pred_region
      _
    $region21: #{simple_dense_net_forward.1} parent=1 // pred_fallthru
      _
    // Predicated region
    $region22: #{simple_dense_net_forward.1} parent=1 // pred_check
      _
    $region23: #{simple_dense_net_forward.1} parent=1 // pred_check_branch
      %36 = sbr.rel (0) target = $region25
    $region24: #{simple_dense_net_forward.1} parent=1 // pred_region
      _
    $region25: #{simple_dense_net_forward.1} parent=1 // pred_fallthru
      _
    // Predicated region
    $region26: #{simple_dense_net_forward.1} parent=1 // pred_check
      _
    $region27: #{simple_dense_net_forward.1} parent=1 // pred_check_branch
      %38 = sbr.rel (0) target = $region29
    $region28: #{simple_dense_net_forward.1} parent=1 // pred_region
      _
    $region29: #{simple_dense_net_forward.1} parent=1 // pred_fallthru
      _
    // Predicated region
    $region30: #{simple_dense_net_forward.1} parent=1 // pred_check
      _
    $region31: #{simple_dense_net_forward.1} parent=1 // pred_check_branch
      %40 = sbr.rel (0) target = $region33
    $region32: #{simple_dense_net_forward.1} parent=1 // pred_region
      _
    $region33: #{simple_dense_net_forward.1} parent=1 // pred_fallthru
      _
    // Predicated region
    $region34: #{simple_dense_net_forward.1} parent=1 // pred_check
      _
    $region35: #{simple_dense_net_forward.1} parent=1 // pred_check_branch
      %42 = sbr.rel (0) target = $region37
    $region36: #{simple_dense_net_forward.1} parent=1 // pred_region
      _
    $region37: #{simple_dense_net_forward.1} parent=1 // pred_fallthru
      _
    // Predicated region
    $region38: #{simple_dense_net_forward.1} parent=1 // pred_check
      _
    $region39: #{simple_dense_net_forward.1} parent=1 // pred_check_branch
      %44 = sbr.rel (0) target = $region41
    $region40: #{simple_dense_net_forward.1} parent=1 // pred_region
      %45 = dma.done [#allocation3], 8192
    $region41: #{simple_dense_net_forward.1} parent=1 // pred_fallthru
      _
    %v47 = vld [vmem:[%s0] sm:$0xff]
    %v48 = vld [vmem:[%s0 + $0x8] sm:$0xff]
    %v49 = vld [vmem:[%s0 + $0x10] sm:$0xff]
    %v50 = vld [vmem:[%s0 + $0x18] sm:$0xff]
    %v51 = vld [vmem:[%s0 + $0x20] sm:$0xff]
    %v52 = vld [vmem:[%s0 + $0x28] sm:$0xff]
    %v53 = vld [vmem:[%s0 + $0x30] sm:$0xff]
    %v54 = vld [vmem:[%s0 + $0x38] sm:$0xff]
    %v55 = vld [vmem:[%s0 + $0x40] sm:$0xff]
    %v56 = vld [vmem:[%s0 + $0x48] sm:$0xff]
    %v57 = vld [vmem:[%s0 + $0x50] sm:$0xff]
    %v58 = vld [vmem:[%s0 + $0x58] sm:$0xff]
    %v59 = vld [vmem:[%s0 + $0x60] sm:$0xff]
    %v60 = vld [vmem:[%s0 + $0x68] sm:$0xff]
    %v61 = vld [vmem:[%s0 + $0x70] sm:$0xff]
    %v62 = vld [vmem:[%s0 + $0x78] sm:$0xff]
    %v63 = vpack.c.bf16 %v55, %v47
    %v64 = vpack.c.bf16 %v56, %v48
    %v65 = vpack.c.bf16 %v57, %v49
    %v66 = vpack.c.bf16 %v58, %v50
    %v67 = vpack.c.bf16 %v59, %v51
    %v68 = vpack.c.bf16 %v60, %v52
    %v69 = vpack.c.bf16 %v61, %v53
    %v70 = vpack.c.bf16 %v62, %v54
    %v71 = vld [vmem:[#allocation2] sm:$0xf]
    %v72 = vld [vmem:[#allocation2 + $0x4] sm:$0xf]
    %v73 = vld [vmem:[#allocation2 + $0x8] sm:$0xf]
    %v74 = vld [vmem:[#allocation2 + $0xc] sm:$0xf]
    %v75 = vld [vmem:[#allocation2 + $0x10] sm:$0xf]
    %v76 = vld [vmem:[#allocation2 + $0x14] sm:$0xf]
    %v77 = vld [vmem:[#allocation2 + $0x18] sm:$0xf]
    %v78 = vld [vmem:[#allocation2 + $0x1c] sm:$0xf]
    %v79 = vld [vmem:[#allocation2 + $0x20] sm:$0xf]
    %v80 = vld [vmem:[#allocation2 + $0x24] sm:$0xf]
    %v81 = vld [vmem:[#allocation2 + $0x28] sm:$0xf]
    %v82 = vld [vmem:[#allocation2 + $0x2c] sm:$0xf]
    %v83 = vld [vmem:[#allocation2 + $0x30] sm:$0xf]
    %v84 = vld [vmem:[#allocation2 + $0x34] sm:$0xf]
    %v85 = vld [vmem:[#allocation2 + $0x38] sm:$0xf]
    %v86 = vld [vmem:[#allocation2 + $0x3c] sm:$0xf]
    %v87 = vld [vmem:[#allocation2 + $0x40] sm:$0xf]
    %v88 = vld [vmem:[#allocation2 + $0x44] sm:$0xf]
    %v89 = vld [vmem:[#allocation2 + $0x48] sm:$0xf]
    %v90 = vld [vmem:[#allocation2 + $0x4c] sm:$0xf]
    %v91 = vld [vmem:[#allocation2 + $0x50] sm:$0xf]
    %v92 = vld [vmem:[#allocation2 + $0x54] sm:$0xf]
    %v93 = vld [vmem:[#allocation2 + $0x58] sm:$0xf]
    %v94 = vld [vmem:[#allocation2 + $0x5c] sm:$0xf]
    %v95 = vld [vmem:[#allocation2 + $0x60] sm:$0xf]
    %v96 = vld [vmem:[#allocation2 + $0x64] sm:$0xf]
    %v97 = vld [vmem:[#allocation2 + $0x68] sm:$0xf]
    %v98 = vld [vmem:[#allocation2 + $0x6c] sm:$0xf]
    %v99 = vld [vmem:[#allocation2 + $0x70] sm:$0xf]
    %v100 = vld [vmem:[#allocation2 + $0x74] sm:$0xf]
    %v101 = vld [vmem:[#allocation2 + $0x78] sm:$0xf]
    %v102 = vld [vmem:[#allocation2 + $0x7c] sm:$0xf]
    %v103 = vld [vmem:[#allocation2 + $0x80] sm:$0xf]
    %v104 = vld [vmem:[#allocation2 + $0x84] sm:$0xf]
    %v105 = vld [vmem:[#allocation2 + $0x88] sm:$0xf]
    %v106 = vld [vmem:[#allocation2 + $0x8c] sm:$0xf]
    %v107 = vld [vmem:[#allocation2 + $0x90] sm:$0xf]
    %v108 = vld [vmem:[#allocation2 + $0x94] sm:$0xf]
    %v109 = vld [vmem:[#allocation2 + $0x98] sm:$0xf]
    %v110 = vld [vmem:[#allocation2 + $0x9c] sm:$0xf]
    %v111 = vld [vmem:[#allocation2 + $0xa0] sm:$0xf]
    %v112 = vld [vmem:[#allocation2 + $0xa4] sm:$0xf]
    %v113 = vld [vmem:[#allocation2 + $0xa8] sm:$0xf]
    %v114 = vld [vmem:[#allocation2 + $0xac] sm:$0xf]
    %v115 = vld [vmem:[#allocation2 + $0xb0] sm:$0xf]
    %v116 = vld [vmem:[#allocation2 + $0xb4] sm:$0xf]
    %v117 = vld [vmem:[#allocation2 + $0xb8] sm:$0xf]
    %v118 = vld [vmem:[#allocation2 + $0xbc] sm:$0xf]
    %v119 = vld [vmem:[#allocation2 + $0xc0] sm:$0xf]
    %v120 = vld [vmem:[#allocation2 + $0xc4] sm:$0xf]
    %v121 = vld [vmem:[#allocation2 + $0xc8] sm:$0xf]
    %v122 = vld [vmem:[#allocation2 + $0xcc] sm:$0xf]
    %v123 = vld [vmem:[#allocation2 + $0xd0] sm:$0xf]
    %v124 = vld [vmem:[#allocation2 + $0xd4] sm:$0xf]
    %v125 = vld [vmem:[#allocation2 + $0xd8] sm:$0xf]
    %v126 = vld [vmem:[#allocation2 + $0xdc] sm:$0xf]
    %v127 = vld [vmem:[#allocation2 + $0xe0] sm:$0xf]
    %v128 = vld [vmem:[#allocation2 + $0xe4] sm:$0xf]
    %v129 = vld [vmem:[#allocation2 + $0xe8] sm:$0xf]
    %v130 = vld [vmem:[#allocation2 + $0xec] sm:$0xf]
    %v131 = vld [vmem:[#allocation2 + $0xf0] sm:$0xf]
    %v132 = vld [vmem:[#allocation2 + $0xf4] sm:$0xf]
    %v133 = vld [vmem:[#allocation2 + $0xf8] sm:$0xf]
    %v134 = vld [vmem:[#allocation2 + $0xfc] sm:$0xf]
    %v135 = vld [vmem:[#allocation2 + $0x100] sm:$0xf]
    %v136 = vld [vmem:[#allocation2 + $0x104] sm:$0xf]
    %v137 = vld [vmem:[#allocation2 + $0x108] sm:$0xf]
    %v138 = vld [vmem:[#allocation2 + $0x10c] sm:$0xf]
    %v139 = vld [vmem:[#allocation2 + $0x110] sm:$0xf]
    %v140 = vld [vmem:[#allocation2 + $0x114] sm:$0xf]
    %v141 = vld [vmem:[#allocation2 + $0x118] sm:$0xf]
    %v142 = vld [vmem:[#allocation2 + $0x11c] sm:$0xf]
    %v143 = vld [vmem:[#allocation2 + $0x120] sm:$0xf]
    %v144 = vld [vmem:[#allocation2 + $0x124] sm:$0xf]
    %v145 = vld [vmem:[#allocation2 + $0x128] sm:$0xf]
    %v146 = vld [vmem:[#allocation2 + $0x12c] sm:$0xf]
    %v147 = vld [vmem:[#allocation2 + $0x130] sm:$0xf]
    %v148 = vld [vmem:[#allocation2 + $0x134] sm:$0xf]
    %v149 = vld [vmem:[#allocation2 + $0x138] sm:$0xf]
    %v150 = vld [vmem:[#allocation2 + $0x13c] sm:$0xf]
    %v151 = vld [vmem:[#allocation2 + $0x140] sm:$0xf]
    %v152 = vld [vmem:[#allocation2 + $0x144] sm:$0xf]
    %v153 = vld [vmem:[#allocation2 + $0x148] sm:$0xf]
    %v154 = vld [vmem:[#allocation2 + $0x14c] sm:$0xf]
    %v155 = vld [vmem:[#allocation2 + $0x150] sm:$0xf]
    %v156 = vld [vmem:[#allocation2 + $0x154] sm:$0xf]
    %v157 = vld [vmem:[#allocation2 + $0x158] sm:$0xf]
    %v158 = vld [vmem:[#allocation2 + $0x15c] sm:$0xf]
    %v159 = vld [vmem:[#allocation2 + $0x160] sm:$0xf]
    %v160 = vld [vmem:[#allocation2 + $0x164] sm:$0xf]
    %v161 = vld [vmem:[#allocation2 + $0x168] sm:$0xf]
    %v162 = vld [vmem:[#allocation2 + $0x16c] sm:$0xf]
    %v163 = vld [vmem:[#allocation2 + $0x170] sm:$0xf]
    %v164 = vld [vmem:[#allocation2 + $0x174] sm:$0xf]
    %v165 = vld [vmem:[#allocation2 + $0x178] sm:$0xf]
    %v166 = vld [vmem:[#allocation2 + $0x17c] sm:$0xf]
    %v167 = vld [vmem:[#allocation2 + $0x180] sm:$0xf]
    %v168 = vld [vmem:[#allocation2 + $0x184] sm:$0xf]
    %v169 = vld [vmem:[#allocation2 + $0x188] sm:$0xf]
    %v170 = vld [vmem:[#allocation2 + $0x18c] sm:$0xf]
    %v171 = vld [vmem:[#allocation2 + $0x190] sm:$0xf]
    %v172 = vld [vmem:[#allocation2 + $0x194] sm:$0xf]
    %v173 = vld [vmem:[#allocation2 + $0x198] sm:$0xf]
    %v174 = vld [vmem:[#allocation2 + $0x19c] sm:$0xf]
    %v175 = vld [vmem:[#allocation2 + $0x1a0] sm:$0xf]
    %v176 = vld [vmem:[#allocation2 + $0x1a4] sm:$0xf]
    %v177 = vld [vmem:[#allocation2 + $0x1a8] sm:$0xf]
    %v178 = vld [vmem:[#allocation2 + $0x1ac] sm:$0xf]
    %v179 = vld [vmem:[#allocation2 + $0x1b0] sm:$0xf]
    %v180 = vld [vmem:[#allocation2 + $0x1b4] sm:$0xf]
    %v181 = vld [vmem:[#allocation2 + $0x1b8] sm:$0xf]
    %v182 = vld [vmem:[#allocation2 + $0x1bc] sm:$0xf]
    %v183 = vld [vmem:[#allocation2 + $0x1c0] sm:$0xf]
    %v184 = vld [vmem:[#allocation2 + $0x1c4] sm:$0xf]
    %v185 = vld [vmem:[#allocation2 + $0x1c8] sm:$0xf]
    %v186 = vld [vmem:[#allocation2 + $0x1cc] sm:$0xf]
    %v187 = vld [vmem:[#allocation2 + $0x1d0] sm:$0xf]
    %v188 = vld [vmem:[#allocation2 + $0x1d4] sm:$0xf]
    %v189 = vld [vmem:[#allocation2 + $0x1d8] sm:$0xf]
    %v190 = vld [vmem:[#allocation2 + $0x1dc] sm:$0xf]
    %v191 = vld [vmem:[#allocation2 + $0x1e0] sm:$0xf]
    %v192 = vld [vmem:[#allocation2 + $0x1e4] sm:$0xf]
    %v193 = vld [vmem:[#allocation2 + $0x1e8] sm:$0xf]
    %v194 = vld [vmem:[#allocation2 + $0x1ec] sm:$0xf]
    %v195 = vld [vmem:[#allocation2 + $0x1f0] sm:$0xf]
    %v196 = vld [vmem:[#allocation2 + $0x1f4] sm:$0xf]
    %v197 = vld [vmem:[#allocation2 + $0x1f8] sm:$0xf]
    %v198 = vld [vmem:[#allocation2 + $0x1fc] sm:$0xf]
    %v199 = vld [vmem:[%s2] sm:$0x1]
    %v201 = vlaneseq
    %v202 = vshrl.u32 %v201, 7
    %v203 = vsub.s32 0, %v202
    %v204 = vrot.slane %v199, %v203
    %v334 = vunpack.c.l.b16 %v71
    %v335 = vunpack.c.l.b16 %v72
    %v336 = vunpack.c.l.b16 %v73
    %v337 = vunpack.c.l.b16 %v74
    %v338 = vunpack.c.l.b16 %v75
    %v339 = vunpack.c.l.b16 %v76
    %v340 = vunpack.c.l.b16 %v77
    %v341 = vunpack.c.l.b16 %v78
    %v342 = vunpack.c.l.b16 %v79
    %v343 = vunpack.c.l.b16 %v80
    %v344 = vunpack.c.l.b16 %v81
    %v345 = vunpack.c.l.b16 %v82
    %v346 = vunpack.c.l.b16 %v83
    %v347 = vunpack.c.l.b16 %v84
    %v348 = vunpack.c.l.b16 %v85
    %v349 = vunpack.c.l.b16 %v86
    %v350 = vunpack.c.l.b16 %v87
    %v351 = vunpack.c.l.b16 %v88
    %v352 = vunpack.c.l.b16 %v89
    %v353 = vunpack.c.l.b16 %v90
    %v354 = vunpack.c.l.b16 %v91
    %v355 = vunpack.c.l.b16 %v92
    %v356 = vunpack.c.l.b16 %v93
    %v357 = vunpack.c.l.b16 %v94
    %v358 = vunpack.c.l.b16 %v95
    %v359 = vunpack.c.l.b16 %v96
    %v360 = vunpack.c.l.b16 %v97
    %v361 = vunpack.c.l.b16 %v98
    %v362 = vunpack.c.l.b16 %v99
    %v363 = vunpack.c.l.b16 %v100
    %v364 = vunpack.c.l.b16 %v101
    %v365 = vunpack.c.l.b16 %v102
    %v366 = vunpack.c.l.b16 %v103
    %v367 = vunpack.c.l.b16 %v104
    %v368 = vunpack.c.l.b16 %v105
    %v369 = vunpack.c.l.b16 %v106
    %v370 = vunpack.c.l.b16 %v107
    %v371 = vunpack.c.l.b16 %v108
    %v372 = vunpack.c.l.b16 %v109
    %v373 = vunpack.c.l.b16 %v110
    %v374 = vunpack.c.l.b16 %v111
    %v375 = vunpack.c.l.b16 %v112
    %v376 = vunpack.c.l.b16 %v113
    %v377 = vunpack.c.l.b16 %v114
    %v378 = vunpack.c.l.b16 %v115
    %v379 = vunpack.c.l.b16 %v116
    %v380 = vunpack.c.l.b16 %v117
    %v381 = vunpack.c.l.b16 %v118
    %v382 = vunpack.c.l.b16 %v119
    %v383 = vunpack.c.l.b16 %v120
    %v384 = vunpack.c.l.b16 %v121
    %v385 = vunpack.c.l.b16 %v122
    %v386 = vunpack.c.l.b16 %v123
    %v387 = vunpack.c.l.b16 %v124
    %v388 = vunpack.c.l.b16 %v125
    %v389 = vunpack.c.l.b16 %v126
    %v390 = vunpack.c.l.b16 %v127
    %v391 = vunpack.c.l.b16 %v128
    %v392 = vunpack.c.l.b16 %v129
    %v393 = vunpack.c.l.b16 %v130
    %v394 = vunpack.c.l.b16 %v131
    %v395 = vunpack.c.l.b16 %v132
    %v396 = vunpack.c.l.b16 %v133
    %v397 = vunpack.c.l.b16 %v134
    %v398 = vunpack.c.l.b16 %v135
    %v399 = vunpack.c.l.b16 %v136
    %v400 = vunpack.c.l.b16 %v137
    %v401 = vunpack.c.l.b16 %v138
    %v402 = vunpack.c.l.b16 %v139
    %v403 = vunpack.c.l.b16 %v140
    %v404 = vunpack.c.l.b16 %v141
    %v405 = vunpack.c.l.b16 %v142
    %v406 = vunpack.c.l.b16 %v143
    %v407 = vunpack.c.l.b16 %v144
    %v408 = vunpack.c.l.b16 %v145
    %v409 = vunpack.c.l.b16 %v146
    %v410 = vunpack.c.l.b16 %v147
    %v411 = vunpack.c.l.b16 %v148
    %v412 = vunpack.c.l.b16 %v149
    %v413 = vunpack.c.l.b16 %v150
    %v414 = vunpack.c.l.b16 %v151
    %v415 = vunpack.c.l.b16 %v152
    %v416 = vunpack.c.l.b16 %v153
    %v417 = vunpack.c.l.b16 %v154
    %v418 = vunpack.c.l.b16 %v155
    %v419 = vunpack.c.l.b16 %v156
    %v420 = vunpack.c.l.b16 %v157
    %v421 = vunpack.c.l.b16 %v158
    %v422 = vunpack.c.l.b16 %v159
    %v423 = vunpack.c.l.b16 %v160
    %v424 = vunpack.c.l.b16 %v161
    %v425 = vunpack.c.l.b16 %v162
    %v426 = vunpack.c.l.b16 %v163
    %v427 = vunpack.c.l.b16 %v164
    %v428 = vunpack.c.l.b16 %v165
    %v429 = vunpack.c.l.b16 %v166
    %v430 = vunpack.c.l.b16 %v167
    %v431 = vunpack.c.l.b16 %v168
    %v432 = vunpack.c.l.b16 %v169
    %v433 = vunpack.c.l.b16 %v170
    %v434 = vunpack.c.l.b16 %v171
    %v435 = vunpack.c.l.b16 %v172
    %v436 = vunpack.c.l.b16 %v173
    %v437 = vunpack.c.l.b16 %v174
    %v438 = vunpack.c.l.b16 %v175
    %v439 = vunpack.c.l.b16 %v176
    %v440 = vunpack.c.l.b16 %v177
    %v441 = vunpack.c.l.b16 %v178
    %v442 = vunpack.c.l.b16 %v179
    %v443 = vunpack.c.l.b16 %v180
    %v444 = vunpack.c.l.b16 %v181
    %v445 = vunpack.c.l.b16 %v182
    %v446 = vunpack.c.l.b16 %v183
    %v447 = vunpack.c.l.b16 %v184
    %v448 = vunpack.c.l.b16 %v185
    %v449 = vunpack.c.l.b16 %v186
    %v450 = vunpack.c.l.b16 %v187
    %v451 = vunpack.c.l.b16 %v188
    %v452 = vunpack.c.l.b16 %v189
    %v453 = vunpack.c.l.b16 %v190
    %v454 = vunpack.c.l.b16 %v191
    %v455 = vunpack.c.l.b16 %v192
    %v456 = vunpack.c.l.b16 %v193
    %v457 = vunpack.c.l.b16 %v194
    %v458 = vunpack.c.l.b16 %v195
    %v459 = vunpack.c.l.b16 %v196
    %v460 = vunpack.c.l.b16 %v197
    %v461 = vunpack.c.l.b16 %v198
    %v462 = vpack.c.b16 %v335, %v334
    %v463 = vpack.c.b16 %v337, %v336
    %v464 = vpack.c.b16 %v339, %v338
    %v465 = vpack.c.b16 %v341, %v340
    %v466 = vpack.c.b16 %v343, %v342
    %v467 = vpack.c.b16 %v345, %v344
    %v468 = vpack.c.b16 %v347, %v346
    %v469 = vpack.c.b16 %v349, %v348
    %v470 = vpack.c.b16 %v351, %v350
    %v471 = vpack.c.b16 %v353, %v352
    %v472 = vpack.c.b16 %v355, %v354
    %v473 = vpack.c.b16 %v357, %v356
    %v474 = vpack.c.b16 %v359, %v358
    %v475 = vpack.c.b16 %v361, %v360
    %v476 = vpack.c.b16 %v363, %v362
    %v477 = vpack.c.b16 %v365, %v364
    %v478 = vpack.c.b16 %v367, %v366
    %v479 = vpack.c.b16 %v369, %v368
    %v480 = vpack.c.b16 %v371, %v370
    %v481 = vpack.c.b16 %v373, %v372
    %v482 = vpack.c.b16 %v375, %v374
    %v483 = vpack.c.b16 %v377, %v376
    %v484 = vpack.c.b16 %v379, %v378
    %v485 = vpack.c.b16 %v381, %v380
    %v486 = vpack.c.b16 %v383, %v382
    %v487 = vpack.c.b16 %v385, %v384
    %v488 = vpack.c.b16 %v387, %v386
    %v489 = vpack.c.b16 %v389, %v388
    %v490 = vpack.c.b16 %v391, %v390
    %v491 = vpack.c.b16 %v393, %v392
    %v492 = vpack.c.b16 %v395, %v394
    %v493 = vpack.c.b16 %v397, %v396
    %v494 = vpack.c.b16 %v399, %v398
    %v495 = vpack.c.b16 %v401, %v400
    %v496 = vpack.c.b16 %v403, %v402
    %v497 = vpack.c.b16 %v405, %v404
    %v498 = vpack.c.b16 %v407, %v406
    %v499 = vpack.c.b16 %v409, %v408
    %v500 = vpack.c.b16 %v411, %v410
    %v501 = vpack.c.b16 %v413, %v412
    %v502 = vpack.c.b16 %v415, %v414
    %v503 = vpack.c.b16 %v417, %v416
    %v504 = vpack.c.b16 %v419, %v418
    %v505 = vpack.c.b16 %v421, %v420
    %v506 = vpack.c.b16 %v423, %v422
    %v507 = vpack.c.b16 %v425, %v424
    %v508 = vpack.c.b16 %v427, %v426
    %v509 = vpack.c.b16 %v429, %v428
    %v510 = vpack.c.b16 %v431, %v430
    %v511 = vpack.c.b16 %v433, %v432
    %v512 = vpack.c.b16 %v435, %v434
    %v513 = vpack.c.b16 %v437, %v436
    %v514 = vpack.c.b16 %v439, %v438
    %v515 = vpack.c.b16 %v441, %v440
    %v516 = vpack.c.b16 %v443, %v442
    %v517 = vpack.c.b16 %v445, %v444
    %v518 = vpack.c.b16 %v447, %v446
    %v519 = vpack.c.b16 %v449, %v448
    %v520 = vpack.c.b16 %v451, %v450
    %v521 = vpack.c.b16 %v453, %v452
    %v522 = vpack.c.b16 %v455, %v454
    %v523 = vpack.c.b16 %v457, %v456
    %v524 = vpack.c.b16 %v459, %v458
    %v525 = vpack.c.b16 %v461, %v460
    %590 = vmatprep.subr.bf16.mxu0 0
    %591 = vmatpush1.bf16.msra.mxu0 %v462
    %592 = vmatprep.subr.bf16.mxu0 0
    %593 = vmatpush1.bf16.msra.mxu0 %v463
    %594 = vmatprep.subr.bf16.mxu0 0
    %595 = vmatpush1.bf16.msra.mxu0 %v464
    %596 = vmatprep.subr.bf16.mxu0 0
    %597 = vmatpush1.bf16.msra.mxu0 %v465
    %598 = vmatprep.subr.bf16.mxu0 0
    %599 = vmatpush1.bf16.msra.mxu0 %v466
    %600 = vmatprep.subr.bf16.mxu0 0
    %601 = vmatpush1.bf16.msra.mxu0 %v467
    %602 = vmatprep.subr.bf16.mxu0 0
    %603 = vmatpush1.bf16.msra.mxu0 %v468
    %604 = vmatprep.subr.bf16.mxu0 0
    %605 = vmatpush1.bf16.msra.mxu0 %v469
    %606 = vmatprep.subr.bf16.mxu0 0
    %607 = vmatpush1.bf16.msra.mxu0 %v470
    %608 = vmatprep.subr.bf16.mxu0 0
    %609 = vmatpush1.bf16.msra.mxu0 %v471
    %610 = vmatprep.subr.bf16.mxu0 0
    %611 = vmatpush1.bf16.msra.mxu0 %v472
    %612 = vmatprep.subr.bf16.mxu0 0
    %613 = vmatpush1.bf16.msra.mxu0 %v473
    %614 = vmatprep.subr.bf16.mxu0 0
    %615 = vmatpush1.bf16.msra.mxu0 %v474
    %616 = vmatprep.subr.bf16.mxu0 0
    %617 = vmatpush1.bf16.msra.mxu0 %v475
    %618 = vmatprep.subr.bf16.mxu0 0
    %619 = vmatpush1.bf16.msra.mxu0 %v476
    %620 = vmatprep.subr.bf16.mxu0 0
    %621 = vmatpush1.bf16.msra.mxu0 %v477
    %622 = vmatprep.mubr.bf16.mxu0 %v64
    %623 = vmatmul.mubr.bf16.gmra.mrb[0].mxu0 %v63
    %v624 = vpop.f32.mrb[0].mxu0
    %v625 = vadd.f32 %v204, %v624
    %v626 = vpop.f32.mrb[0].mxu0
    %v627 = vpop.f32.mrb[0].mxu0
    %v628 = vadd.f32 %v204, %v627
    %v629 = vpop.f32.mrb[0].mxu0
    %630 = vdwg.mxu0
    %631 = vmatprep.subr.bf16.mxu0 0
    %632 = vmatpush1.bf16.msra.mxu0 %v478
    %633 = vmatprep.subr.bf16.mxu0 0
    %634 = vmatpush1.bf16.msra.mxu0 %v479
    %635 = vmatprep.subr.bf16.mxu0 0
    %636 = vmatpush1.bf16.msra.mxu0 %v480
    %637 = vmatprep.subr.bf16.mxu0 0
    %638 = vmatpush1.bf16.msra.mxu0 %v481
    %639 = vmatprep.subr.bf16.mxu0 0
    %640 = vmatpush1.bf16.msra.mxu0 %v482
    %641 = vmatprep.subr.bf16.mxu0 0
    %642 = vmatpush1.bf16.msra.mxu0 %v483
    %643 = vmatprep.subr.bf16.mxu0 0
    %644 = vmatpush1.bf16.msra.mxu0 %v484
    %645 = vmatprep.subr.bf16.mxu0 0
    %646 = vmatpush1.bf16.msra.mxu0 %v485
    %647 = vmatprep.subr.bf16.mxu0 0
    %648 = vmatpush1.bf16.msra.mxu0 %v486
    %649 = vmatprep.subr.bf16.mxu0 0
    %650 = vmatpush1.bf16.msra.mxu0 %v487
    %651 = vmatprep.subr.bf16.mxu0 0
    %652 = vmatpush1.bf16.msra.mxu0 %v488
    %653 = vmatprep.subr.bf16.mxu0 0
    %654 = vmatpush1.bf16.msra.mxu0 %v489
    %655 = vmatprep.subr.bf16.mxu0 0
    %656 = vmatpush1.bf16.msra.mxu0 %v490
    %657 = vmatprep.subr.bf16.mxu0 0
    %658 = vmatpush1.bf16.msra.mxu0 %v491
    %659 = vmatprep.subr.bf16.mxu0 0
    %660 = vmatpush1.bf16.msra.mxu0 %v492
    %661 = vmatprep.subr.bf16.mxu0 0
    %662 = vmatpush1.bf16.msra.mxu0 %v493
    %663 = vmatprep.mubr.bf16.mxu0 %v66
    %664 = vmatmul.mubr.bf16.gmra.mrb[0].mxu0 %v65
    %v665 = vpop.f32.mrb[0].mxu0
    %v666 = vadd.f32 %v625, %v665
    %v667 = vpop.f32.mrb[0].mxu0
    %v668 = vpop.f32.mrb[0].mxu0
    %v669 = vadd.f32 %v628, %v668
    %v670 = vpop.f32.mrb[0].mxu0
    %671 = vdwg.mxu0
    %672 = vmatprep.subr.bf16.mxu0 0
    %673 = vmatpush1.bf16.msra.mxu0 %v494
    %674 = vmatprep.subr.bf16.mxu0 0
    %675 = vmatpush1.bf16.msra.mxu0 %v495
    %676 = vmatprep.subr.bf16.mxu0 0
    %677 = vmatpush1.bf16.msra.mxu0 %v496
    %678 = vmatprep.subr.bf16.mxu0 0
    %679 = vmatpush1.bf16.msra.mxu0 %v497
    %680 = vmatprep.subr.bf16.mxu0 0
    %681 = vmatpush1.bf16.msra.mxu0 %v498
    %682 = vmatprep.subr.bf16.mxu0 0
    %683 = vmatpush1.bf16.msra.mxu0 %v499
    %684 = vmatprep.subr.bf16.mxu0 0
    %685 = vmatpush1.bf16.msra.mxu0 %v500
    %686 = vmatprep.subr.bf16.mxu0 0
    %687 = vmatpush1.bf16.msra.mxu0 %v501
    %688 = vmatprep.subr.bf16.mxu0 0
    %689 = vmatpush1.bf16.msra.mxu0 %v502
    %690 = vmatprep.subr.bf16.mxu0 0
    %691 = vmatpush1.bf16.msra.mxu0 %v503
    %692 = vmatprep.subr.bf16.mxu0 0
    %693 = vmatpush1.bf16.msra.mxu0 %v504
    %694 = vmatprep.subr.bf16.mxu0 0
    %695 = vmatpush1.bf16.msra.mxu0 %v505
    %696 = vmatprep.subr.bf16.mxu0 0
    %697 = vmatpush1.bf16.msra.mxu0 %v506
    %698 = vmatprep.subr.bf16.mxu0 0
    %699 = vmatpush1.bf16.msra.mxu0 %v507
    %700 = vmatprep.subr.bf16.mxu0 0
    %701 = vmatpush1.bf16.msra.mxu0 %v508
    %702 = vmatprep.subr.bf16.mxu0 0
    %703 = vmatpush1.bf16.msra.mxu0 %v509
    %704 = vmatprep.mubr.bf16.mxu0 %v68
    %705 = vmatmul.mubr.bf16.gmra.mrb[0].mxu0 %v67
    %v706 = vpop.f32.mrb[0].mxu0
    %v707 = vadd.f32 %v666, %v706
    %v708 = vpop.f32.mrb[0].mxu0
    %v709 = vpop.f32.mrb[0].mxu0
    %v710 = vadd.f32 %v669, %v709
    %v711 = vpop.f32.mrb[0].mxu0
    %712 = vdwg.mxu0
    %713 = vmatprep.subr.bf16.mxu0 0
    %714 = vmatpush1.bf16.msra.mxu0 %v510
    %715 = vmatprep.subr.bf16.mxu0 0
    %716 = vmatpush1.bf16.msra.mxu0 %v511
    %717 = vmatprep.subr.bf16.mxu0 0
    %718 = vmatpush1.bf16.msra.mxu0 %v512
    %719 = vmatprep.subr.bf16.mxu0 0
    %720 = vmatpush1.bf16.msra.mxu0 %v513
    %721 = vmatprep.subr.bf16.mxu0 0
    %722 = vmatpush1.bf16.msra.mxu0 %v514
    %723 = vmatprep.subr.bf16.mxu0 0
    %724 = vmatpush1.bf16.msra.mxu0 %v515
    %725 = vmatprep.subr.bf16.mxu0 0
    %726 = vmatpush1.bf16.msra.mxu0 %v516
    %727 = vmatprep.subr.bf16.mxu0 0
    %728 = vmatpush1.bf16.msra.mxu0 %v517
    %729 = vmatprep.subr.bf16.mxu0 0
    %730 = vmatpush1.bf16.msra.mxu0 %v518
    %731 = vmatprep.subr.bf16.mxu0 0
    %732 = vmatpush1.bf16.msra.mxu0 %v519
    %733 = vmatprep.subr.bf16.mxu0 0
    %734 = vmatpush1.bf16.msra.mxu0 %v520
    %735 = vmatprep.subr.bf16.mxu0 0
    %736 = vmatpush1.bf16.msra.mxu0 %v521
    %737 = vmatprep.subr.bf16.mxu0 0
    %738 = vmatpush1.bf16.msra.mxu0 %v522
    %739 = vmatprep.subr.bf16.mxu0 0
    %740 = vmatpush1.bf16.msra.mxu0 %v523
    %741 = vmatprep.subr.bf16.mxu0 0
    %742 = vmatpush1.bf16.msra.mxu0 %v524
    %743 = vmatprep.subr.bf16.mxu0 0
    %744 = vmatpush1.bf16.msra.mxu0 %v525
    %745 = vmatprep.mubr.bf16.mxu0 %v70
    %746 = vmatmul.mubr.bf16.gmra.mrb[0].mxu0 %v69
    %v747 = vpop.f32.mrb[0].mxu0
    %v748 = vadd.f32 %v707, %v747
    %v749 = vpop.f32.mrb[0].mxu0
    %v750 = vpop.f32.mrb[0].mxu0
    %v751 = vadd.f32 %v710, %v750
    %v752 = vpop.f32.mrb[0].mxu0
    %753 = vdwg.mxu0
    %v754 = vmax.f32 %v748, 0.0
    %v755 = vmax.f32 %v751, 0.0
    %v756 = vpack.c.bf16 %v755, %v754
    %v757 = vld [vmem:[%s3] sm:$0xf]
    %v758 = vld [vmem:[%s3 + $0x4] sm:$0xf]
    %v759 = vld [vmem:[%s3 + $0x8] sm:$0xf]
    %v760 = vld [vmem:[%s3 + $0xc] sm:$0xf]
    %v761 = vld [vmem:[%s3 + $0x10] sm:$0xf]
    %v762 = vld [vmem:[%s3 + $0x14] sm:$0xf]
    %v763 = vld [vmem:[%s3 + $0x18] sm:$0xf]
    %v764 = vld [vmem:[%s3 + $0x1c] sm:$0xf]
    %v765 = vld [vmem:[%s3 + $0x20] sm:$0xf]
    %v766 = vld [vmem:[%s3 + $0x24] sm:$0xf]
    %v767 = vld [vmem:[%s3 + $0x28] sm:$0xf]
    %v768 = vld [vmem:[%s3 + $0x2c] sm:$0xf]
    %v769 = vld [vmem:[%s3 + $0x30] sm:$0xf]
    %v770 = vld [vmem:[%s3 + $0x34] sm:$0xf]
    %v771 = vld [vmem:[%s3 + $0x38] sm:$0xf]
    %v772 = vld [vmem:[%s3 + $0x3c] sm:$0xf]
    %v773 = vld [vmem:[%s4] sm:$0x1]
    %v775 = vlaneseq
    %v776 = vshrl.u32 %v775, 7
    %v777 = vsub.s32 0, %v776
    %v778 = vrot.slane %v773, %v777
    %v796 = vunpack.c.l.b16 %v757
    %v797 = vunpack.c.l.b16 %v758
    %v798 = vunpack.c.l.b16 %v759
    %v799 = vunpack.c.l.b16 %v760
    %v800 = vunpack.c.l.b16 %v761
    %v801 = vunpack.c.l.b16 %v762
    %v802 = vunpack.c.l.b16 %v763
    %v803 = vunpack.c.l.b16 %v764
    %v804 = vunpack.c.l.b16 %v765
    %v805 = vunpack.c.l.b16 %v766
    %v806 = vunpack.c.l.b16 %v767
    %v807 = vunpack.c.l.b16 %v768
    %v808 = vunpack.c.l.b16 %v769
    %v809 = vunpack.c.l.b16 %v770
    %v810 = vunpack.c.l.b16 %v771
    %v811 = vunpack.c.l.b16 %v772
    %v812 = vpack.c.b16 %v797, %v796
    %v813 = vpack.c.b16 %v799, %v798
    %v814 = vpack.c.b16 %v801, %v800
    %v815 = vpack.c.b16 %v803, %v802
    %v816 = vpack.c.b16 %v805, %v804
    %v817 = vpack.c.b16 %v807, %v806
    %v818 = vpack.c.b16 %v809, %v808
    %v819 = vpack.c.b16 %v811, %v810
    %828 = vmatprep.subr.bf16.mxu0 0
    %829 = vmatpush1.bf16.msra.mxu0 %v812
    %830 = vmatprep.subr.bf16.mxu0 0
    %831 = vmatpush1.bf16.msra.mxu0 %v813
    %832 = vmatprep.subr.bf16.mxu0 0
    %833 = vmatpush1.bf16.msra.mxu0 %v814
    %834 = vmatprep.subr.bf16.mxu0 0
    %835 = vmatpush1.bf16.msra.mxu0 %v815
    %836 = vmatprep.subr.bf16.mxu0 0
    %837 = vmatpush1.bf16.msra.mxu0 %v816
    %838 = vmatprep.subr.bf16.mxu0 0
    %839 = vmatpush1.bf16.msra.mxu0 %v817
    %840 = vmatprep.subr.bf16.mxu0 0
    %841 = vmatpush1.bf16.msra.mxu0 %v818
    %842 = vmatprep.subr.bf16.mxu0 0
    %843 = vmatpush1.bf16.msra.mxu0 %v819
    %844 = vmatprep.subr.bf16.mxu0 0
    %845 = vmatpush1.bf16.msra.mxu0 0
    %846 = vmatprep.subr.bf16.mxu0 0
    %847 = vmatpush1.bf16.msra.mxu0 0
    %848 = vmatprep.subr.bf16.mxu0 0
    %849 = vmatpush1.bf16.msra.mxu0 0
    %850 = vmatprep.subr.bf16.mxu0 0
    %851 = vmatpush1.bf16.msra.mxu0 0
    %852 = vmatprep.subr.bf16.mxu0 0
    %853 = vmatpush1.bf16.msra.mxu0 0
    %854 = vmatprep.subr.bf16.mxu0 0
    %855 = vmatpush1.bf16.msra.mxu0 0
    %856 = vmatprep.subr.bf16.mxu0 0
    %857 = vmatpush1.bf16.msra.mxu0 0
    %858 = vmatprep.subr.bf16.mxu0 0
    %859 = vmatpush1.bf16.msra.mxu0 0
    %860 = vmatprep.mubr.bf16.mxu0 0
    %861 = vmatmul.mubr.bf16.gmra.mrb[0].mxu0 %v756
    %v862 = vpop.f32.mrb[0].mxu0
    %v863 = vadd.f32 %v778, %v862
    %v864 = vpop.f32.mrb[0].mxu0
    %v865 = vpop.f32.mrb[0].mxu0
    %v866 = vadd.f32 %v778, %v865
    %v867 = vpop.f32.mrb[0].mxu0
    %868 = vdwg.mxu0
    %v869 = vmax.f32 %v863, 0.0
    %v870 = vmax.f32 %v866, 0.0
    %v871 = vpack.c.bf16 %v870, %v869
    %v872 = vld [vmem:[%s5] sm:$0xf]
    %v873 = vld [vmem:[%s5 + $0x4] sm:$0xf]
    %v874 = vld [vmem:[%s5 + $0x8] sm:$0xf]
    %v875 = vld [vmem:[%s5 + $0xc] sm:$0xf]
    %v876 = vld [vmem:[%s5 + $0x10] sm:$0xf]
    %v877 = vld [vmem:[%s5 + $0x14] sm:$0xf]
    %v878 = vld [vmem:[%s5 + $0x18] sm:$0xf]
    %v879 = vld [vmem:[%s5 + $0x1c] sm:$0xf]
    %v880 = vld [vmem:[%s5 + $0x20] sm:$0xf]
    %v881 = vld [vmem:[%s5 + $0x24] sm:$0xf]
    %v882 = vld [vmem:[%s5 + $0x28] sm:$0xf]
    %v883 = vld [vmem:[%s5 + $0x2c] sm:$0xf]
    %v884 = vld [vmem:[%s5 + $0x30] sm:$0xf]
    %v885 = vld [vmem:[%s5 + $0x34] sm:$0xf]
    %v886 = vld [vmem:[%s5 + $0x38] sm:$0xf]
    %v887 = vld [vmem:[%s5 + $0x3c] sm:$0xf]
    %v888 = vld [vmem:[%s6] sm:$0x1]
    %v890 = vlaneseq
    %v891 = vshrl.u32 %v890, 7
    %v892 = vsub.s32 0, %v891
    %v893 = vrot.slane %v888, %v892
    %v911 = vunpack.c.l.b16 %v872
    %v912 = vunpack.c.l.b16 %v873
    %v913 = vunpack.c.l.b16 %v874
    %v914 = vunpack.c.l.b16 %v875
    %v915 = vunpack.c.l.b16 %v876
    %v916 = vunpack.c.l.b16 %v877
    %v917 = vunpack.c.l.b16 %v878
    %v918 = vunpack.c.l.b16 %v879
    %v919 = vunpack.c.l.b16 %v880
    %v920 = vunpack.c.l.b16 %v881
    %v921 = vunpack.c.l.b16 %v882
    %v922 = vunpack.c.l.b16 %v883
    %v923 = vunpack.c.l.b16 %v884
    %v924 = vunpack.c.l.b16 %v885
    %v925 = vunpack.c.l.b16 %v886
    %v926 = vunpack.c.l.b16 %v887
    %v927 = vpack.c.b16 %v912, %v911
    %v928 = vpack.c.b16 %v914, %v913
    %v929 = vpack.c.b16 %v916, %v915
    %v930 = vpack.c.b16 %v918, %v917
    %v931 = vpack.c.b16 %v920, %v919
    %v932 = vpack.c.b16 %v922, %v921
    %v933 = vpack.c.b16 %v924, %v923
    %v934 = vpack.c.b16 %v926, %v925
    %943 = vmatprep.subr.bf16.mxu0 0
    %944 = vmatpush1.bf16.msra.mxu0 %v927
    %945 = vmatprep.subr.bf16.mxu0 0
    %946 = vmatpush1.bf16.msra.mxu0 %v928
    %947 = vmatprep.subr.bf16.mxu0 0
    %948 = vmatpush1.bf16.msra.mxu0 %v929
    %949 = vmatprep.subr.bf16.mxu0 0
    %950 = vmatpush1.bf16.msra.mxu0 %v930
    %951 = vmatprep.subr.bf16.mxu0 0
    %952 = vmatpush1.bf16.msra.mxu0 %v931
    %953 = vmatprep.subr.bf16.mxu0 0
    %954 = vmatpush1.bf16.msra.mxu0 %v932
    %955 = vmatprep.subr.bf16.mxu0 0
    %956 = vmatpush1.bf16.msra.mxu0 %v933
    %957 = vmatprep.subr.bf16.mxu0 0
    %958 = vmatpush1.bf16.msra.mxu0 %v934
    %959 = vmatprep.subr.bf16.mxu0 0
    %960 = vmatpush1.bf16.msra.mxu0 0
    %961 = vmatprep.subr.bf16.mxu0 0
    %962 = vmatpush1.bf16.msra.mxu0 0
    %963 = vmatprep.subr.bf16.mxu0 0
    %964 = vmatpush1.bf16.msra.mxu0 0
    %965 = vmatprep.subr.bf16.mxu0 0
    %966 = vmatpush1.bf16.msra.mxu0 0
    %967 = vmatprep.subr.bf16.mxu0 0
    %968 = vmatpush1.bf16.msra.mxu0 0
    %969 = vmatprep.subr.bf16.mxu0 0
    %970 = vmatpush1.bf16.msra.mxu0 0
    %971 = vmatprep.subr.bf16.mxu0 0
    %972 = vmatpush1.bf16.msra.mxu0 0
    %973 = vmatprep.subr.bf16.mxu0 0
    %974 = vmatpush1.bf16.msra.mxu0 0
    %975 = vmatprep.mubr.bf16.mxu0 0
    %976 = vmatmul.mubr.bf16.gmra.mrb[0].mxu0 %v871
    %v977 = vpop.f32.mrb[0].mxu0
    %v978 = vadd.f32 %v893, %v977
    %v979 = vpop.f32.mrb[0].mxu0
    %v980 = vpop.f32.mrb[0].mxu0
    %v981 = vadd.f32 %v893, %v980
    %v982 = vpop.f32.mrb[0].mxu0
    %983 = vdwg.mxu0
    %v984 = vmax.f32 %v978, 0.0
    %v985 = vmax.f32 %v981, 0.0
    %v986 = vpack.c.bf16 %v985, %v984
    %v987 = vld [vmem:[%s7] sm:$0xf]
    %v988 = vld [vmem:[%s7 + $0x4] sm:$0xf]
    %v989 = vld [vmem:[%s7 + $0x8] sm:$0xf]
    %v990 = vld [vmem:[%s7 + $0xc] sm:$0xf]
    %v991 = vld [vmem:[%s7 + $0x10] sm:$0xf]
    %v992 = vld [vmem:[%s7 + $0x14] sm:$0xf]
    %v993 = vld [vmem:[%s7 + $0x18] sm:$0xf]
    %v994 = vld [vmem:[%s7 + $0x1c] sm:$0xf]
    %v995 = vld [vmem:[%s7 + $0x20] sm:$0xf]
    %v996 = vld [vmem:[%s7 + $0x24] sm:$0xf]
    %v997 = vld [vmem:[%s7 + $0x28] sm:$0xf]
    %v998 = vld [vmem:[%s7 + $0x2c] sm:$0xf]
    %v999 = vld [vmem:[%s7 + $0x30] sm:$0xf]
    %v1000 = vld [vmem:[%s7 + $0x34] sm:$0xf]
    %v1001 = vld [vmem:[%s7 + $0x38] sm:$0xf]
    %v1002 = vld [vmem:[%s7 + $0x3c] sm:$0xf]
    %v1003 = vld [vmem:[%s8] sm:$0x1]
    %v1005 = vlaneseq
    %v1006 = vshrl.u32 %v1005, 7
    %v1007 = vsub.s32 0, %v1006
    %v1008 = vrot.slane %v1003, %v1007
    %v1026 = vunpack.c.l.b16 %v987
    %v1027 = vunpack.c.l.b16 %v988
    %v1028 = vunpack.c.l.b16 %v989
    %v1029 = vunpack.c.l.b16 %v990
    %v1030 = vunpack.c.l.b16 %v991
    %v1031 = vunpack.c.l.b16 %v992
    %v1032 = vunpack.c.l.b16 %v993
    %v1033 = vunpack.c.l.b16 %v994
    %v1034 = vunpack.c.l.b16 %v995
    %v1035 = vunpack.c.l.b16 %v996
    %v1036 = vunpack.c.l.b16 %v997
    %v1037 = vunpack.c.l.b16 %v998
    %v1038 = vunpack.c.l.b16 %v999
    %v1039 = vunpack.c.l.b16 %v1000
    %v1040 = vunpack.c.l.b16 %v1001
    %v1041 = vunpack.c.l.b16 %v1002
    %v1042 = vpack.c.b16 %v1027, %v1026
    %v1043 = vpack.c.b16 %v1029, %v1028
    %v1044 = vpack.c.b16 %v1031, %v1030
    %v1045 = vpack.c.b16 %v1033, %v1032
    %v1046 = vpack.c.b16 %v1035, %v1034
    %v1047 = vpack.c.b16 %v1037, %v1036
    %v1048 = vpack.c.b16 %v1039, %v1038
    %v1049 = vpack.c.b16 %v1041, %v1040
    %1058 = vmatprep.subr.bf16.mxu0 0
    %1059 = vmatpush1.bf16.msra.mxu0 %v1042
    %1060 = vmatprep.subr.bf16.mxu0 0
    %1061 = vmatpush1.bf16.msra.mxu0 %v1043
    %1062 = vmatprep.subr.bf16.mxu0 0
    %1063 = vmatpush1.bf16.msra.mxu0 %v1044
    %1064 = vmatprep.subr.bf16.mxu0 0
    %1065 = vmatpush1.bf16.msra.mxu0 %v1045
    %1066 = vmatprep.subr.bf16.mxu0 0
    %1067 = vmatpush1.bf16.msra.mxu0 %v1046
    %1068 = vmatprep.subr.bf16.mxu0 0
    %1069 = vmatpush1.bf16.msra.mxu0 %v1047
    %1070 = vmatprep.subr.bf16.mxu0 0
    %1071 = vmatpush1.bf16.msra.mxu0 %v1048
    %1072 = vmatprep.subr.bf16.mxu0 0
    %1073 = vmatpush1.bf16.msra.mxu0 %v1049
    %1074 = vmatprep.subr.bf16.mxu0 0
    %1075 = vmatpush1.bf16.msra.mxu0 0
    %1076 = vmatprep.subr.bf16.mxu0 0
    %1077 = vmatpush1.bf16.msra.mxu0 0
    %1078 = vmatprep.subr.bf16.mxu0 0
    %1079 = vmatpush1.bf16.msra.mxu0 0
    %1080 = vmatprep.subr.bf16.mxu0 0
    %1081 = vmatpush1.bf16.msra.mxu0 0
    %1082 = vmatprep.subr.bf16.mxu0 0
    %1083 = vmatpush1.bf16.msra.mxu0 0
    %1084 = vmatprep.subr.bf16.mxu0 0
    %1085 = vmatpush1.bf16.msra.mxu0 0
    %1086 = vmatprep.subr.bf16.mxu0 0
    %1087 = vmatpush1.bf16.msra.mxu0 0
    %1088 = vmatprep.subr.bf16.mxu0 0
    %1089 = vmatpush1.bf16.msra.mxu0 0
    %1090 = vmatprep.mubr.bf16.mxu0 0
    %1091 = vmatmul.mubr.bf16.gmra.mrb[0].mxu0 %v986
    %v1092 = vpop.f32.mrb[0].mxu0
    %v1093 = vadd.f32 %v1008, %v1092
    %v1094 = vpop.f32.mrb[0].mxu0
    %v1095 = vpop.f32.mrb[0].mxu0
    %v1096 = vadd.f32 %v1008, %v1095
    %v1097 = vpop.f32.mrb[0].mxu0
    %1098 = vdwg.mxu0
    %v1099 = vpack.c.bf16 %v1096, %v1093
    %v1101 = vunpack.c.l.b16 %v1099
    %v1102 = vunpack.c.h.b16 %v1099
    %v1103 = vpack.c.b16 %v1101, %v1101
    %v1104 = vpack.c.b16 %v1102, %v1102
    %1107 = vst [vmem:[%s9] sm:$0xf] %v1103
    %1108 = vst [vmem:[%s9 + $0x4] sm:$0xf] %v1104
    // Predicated region
    $region42: #{simple_dense_net_forward.1} parent=1 // pred_check
      _
    $region43: #{simple_dense_net_forward.1} parent=1 // pred_check_branch
      %1110 = sbr.rel (0) target = $region45
    $region44: #{simple_dense_net_forward.1} parent=1 // pred_region
      _
    $region45: #{simple_dense_net_forward.1} parent=1 // pred_fallthru
      _
    // Predicated region
    $region46: #{simple_dense_net_forward.1} parent=1 // pred_check
      _
    $region47: #{simple_dense_net_forward.1} parent=1 // pred_check_branch
      %1112 = sbr.rel (0) target = $region49
    $region48: #{simple_dense_net_forward.1} parent=1 // pred_region
      _
    $region49: #{simple_dense_net_forward.1} parent=1 // pred_fallthru
      _
    %1113 = vsyncpa [#allocation3], 1

</llo_original>
